<compile_context>
chip_gen: v5e
topology: v5e:2x2
jax: 0.10.0
libtpu: 0.0.40
codegen_flags: <defaults>
</compile_context>

<pallas_src>
import math

import jax
import jax.numpy as jnp
from jax.experimental import pallas as pl
from jax.experimental.pallas import tpu as pltpu

_LANES = 128
_SUBLANES = 8
_CHUNK_ROWS = 128  # rows per inner fori_loop step; also the multi-tile row alignment


def _cdiv(a, b):
    return -(-a // b)


def _round_up(a, b):
    return _cdiv(a, b) * b


def _bce_elem(x, t, pw_m1):
    """Numerically-stable BCE-with-logits per element (PyTorch-equivalent)."""
    x = x.astype(jnp.float32)
    t = t.astype(jnp.float32)
    softplus_neg_abs = jnp.log1p(jnp.exp(-jnp.abs(x))) + jnp.maximum(-x, 0.0)
    log_weight = pw_m1 * t + 1.0
    return (1.0 - t) * x + log_weight * softplus_neg_abs


def _bce_sum_jnp(x, t, pos_weight):
    """Plain-JAX fallback (ragged tails / tiny odd shapes): fused elementwise + reduce."""
    return jnp.sum(_bce_elem(x, t, float(pos_weight) - 1.0))


def _default_block_rows():
    """Per-generation tile rows: 8 MiB/block pair on v6e/v7x, 4 MiB on v5e/unknown."""
    try:
        kind = jax.devices()[0].device_kind.lower()
    except Exception:
        return 4096
    if ("v6" in kind) or ("v7" in kind) or ("7x" in kind):
        return 8192  # 16 MiB double-buffered inputs << 32 MiB default scoped VMEM
    return 4096      # v5e: stay well inside the 16 MiB default scoped VMEM


def _choose_tiling(rows, block_rows):
    """Pick (tm, num_tiles). Multi-tile tm is a multiple of _CHUNK_ROWS; force >= 2
    even tiles when there is enough work so both v7x TensorCores are fed."""
    nt = _cdiv(rows, block_rows)
    if rows >= 2 * _CHUNK_ROWS:
        nt = max(nt, 2)
        if nt % 2:
            nt += 1
    if nt <= 1:
        return rows, 1  # single full-array block (always layout-legal)
    tm = _round_up(_cdiv(rows, nt), _CHUNK_ROWS)
    num_tiles = _cdiv(rows, tm)
    return tm, num_tiles


def _make_bce_kernel(pos_weight, tm, num_tiles, valid_rows_last):
    """Build the per-tile kernel with all shape/masking decisions baked in statically."""
    pw_m1 = float(pos_weight) - 1.0
    use_loop = (tm % _CHUNK_ROWS == 0)
    needs_mask = (valid_rows_last != tm)  # only possible on the multi-tile (loop) path
    ln = _LANES

    def kernel(x_ref, t_ref, out_ref):
        if use_loop:
            n_chunks = tm // _CHUNK_ROWS
            unroll = min(2, n_chunks)

            def fold(masked):
                # Inner loop over 128-row sub-chunks: intermediates stay chunk-sized,
                # the running partial is a single (8,128) f32 vreg carried by fori_loop.
                def body(c, acc):
                    r0 = pl.multiple_of(c * _CHUNK_ROWS, _CHUNK_ROWS)
                    e = _bce_elem(x_ref[pl.ds(r0, _CHUNK_ROWS), :],
                                  t_ref[pl.ds(r0, _CHUNK_ROWS), :], pw_m1)
                    if masked:
                        row = r0 + jax.lax.broadcasted_iota(
                            jnp.int32, (_CHUNK_ROWS, ln), 0)
                        e = jnp.where(row < valid_rows_last, e, 0.0)
                    # (chunk,128) -> (chunk/8, 8, 128) fold: pure full-vreg VALU adds.
                    return acc + e.reshape(_CHUNK_ROWS // _SUBLANES, _SUBLANES, ln).sum(axis=0)

                return jax.lax.fori_loop(
                    0, n_chunks, body,
                    jnp.zeros((_SUBLANES, ln), jnp.float32), unroll=unroll)

            if needs_mask:
                # Mask only exists on the last tile; all other tiles run the cheap path.
                is_last = pl.program_id(0) == num_tiles - 1

                @pl.when(is_last)
                def _():
                    out_ref[...] = fold(True).reshape(1, _SUBLANES, ln)

                @pl.when(pl.program_id(0) != num_tiles - 1)
                def _():
                    out_ref[...] = fold(False).reshape(1, _SUBLANES, ln)
            else:
                out_ref[...] = fold(False).reshape(1, _SUBLANES, ln)
        else:
            # Single full-array block (small inputs, tm == rows, tm % 8 == 0 guaranteed
            # by the wrapper). Straight-line compute + VALU sublane fold.
            e = _bce_elem(x_ref[...], t_ref[...], pw_m1)
            out_ref[...] = (
                e.reshape(tm // _SUBLANES, _SUBLANES, ln).sum(axis=0)
                .reshape(1, _SUBLANES, ln))

    return kernel


def _bce_partial_sum_pallas(x2d, t2d, pos_weight, block_rows):
    """Sum of BCE-with-logits elements over a (rows, 128) lane-dense slab."""
    rows, lanes = x2d.shape
    assert lanes == _LANES
    tm, num_tiles = _choose_tiling(rows, block_rows)
    valid_rows_last = rows - (num_tiles - 1) * tm

    if num_tiles == 1 and tm % _SUBLANES != 0:
        # Tiny odd-row slab (< 256 rows and not sublane-aligned): a Pallas call buys
        # nothing here; let XLA fuse it.
        return _bce_sum_jnp(x2d, t2d, pos_weight)

    kernel = _make_bce_kernel(float(pos_weight), tm, num_tiles, valid_rows_last)

    n_elems = rows * lanes
    cost = pl.CostEstimate(
        flops=10 * n_elems,
        transcendentals=2 * n_elems,
        bytes_accessed=n_elems * (x2d.dtype.itemsize + t2d.dtype.itemsize)
        + num_tiles * _SUBLANES * _LANES * 4,
    )

    partials = pl.pallas_call(
        kernel,
        out_shape=jax.ShapeDtypeStruct((num_tiles, _SUBLANES, _LANES), jnp.float32),
        grid_spec=pltpu.PrefetchScalarGridSpec(
            num_scalar_prefetch=0,
            grid=(num_tiles,),
            in_specs=[
                pl.BlockSpec((tm, _LANES), lambda i: (i, 0)),
                pl.BlockSpec((tm, _LANES), lambda i: (i, 0)),
            ],
            out_specs=pl.BlockSpec((1, _SUBLANES, _LANES), lambda i: (i, 0, 0)),
        ),
        compiler_params=pltpu.CompilerParams(
            dimension_semantics=("parallel",),  # independent tiles -> both v7x TCs
        ),
        cost_estimate=cost,
    )(x2d, t2d)
    return jnp.sum(partials)


def simple_loss(ypred, ytgt, pos_weight, *, block_rows=None):
    """BCEWithLogitsLoss(pos_weight=[pos_weight])(ypred, ytgt), mean reduction.

    ypred, ytgt: same shape, any rank, any float dtype (cast to f32 in-kernel).
    pos_weight: Python float (module init-time constant).
    Returns a scalar float32 loss.
    """
    assert ypred.shape == ytgt.shape
    total = math.prod(ypred.shape) if ypred.shape else 1
    if block_rows is None:
        block_rows = _default_block_rows()

    rows = total // _LANES
    tail = total - rows * _LANES

    loss_sum = jnp.float32(0.0)
    if rows > 0:
        if tail == 0:
            x2d = ypred.reshape(rows, _LANES)  # zero-copy lane-dense view
            t2d = ytgt.reshape(rows, _LANES)
        else:
            # Rare ragged case (total % 128 != 0): peel the lane-aligned prefix.  This
            # slice may materialize a copy of the prefix, but it replaces the old full
            # jnp.pad of BOTH operands and keeps all lane masking out of the kernel.
            x2d = ypred.reshape(-1)[: rows * _LANES].reshape(rows, _LANES)
            t2d = ytgt.reshape(-1)[: rows * _LANES].reshape(rows, _LANES)
        loss_sum = loss_sum + _bce_partial_sum_pallas(x2d, t2d, pos_weight, block_rows)
    if tail > 0:
        # Sub-row tail (< 128 elements): trivial, plain fused XLA ops.
        xt = ypred.reshape(-1)[rows * _LANES:]
        tt = ytgt.reshape(-1)[rows * _LANES:]
        loss_sum = loss_sum + _bce_sum_jnp(xt, tt, pos_weight)

    return loss_sum / jnp.float32(total)


def _ref_loss(x, t, pos_weight):
    """Pure-JAX reference of PyTorch's BCEWithLogitsLoss(pos_weight), mean reduction."""
    x = x.astype(jnp.float32)
    t = t.astype(jnp.float32)
    lw = (pos_weight - 1.0) * t + 1.0
    return jnp.mean((1.0 - t) * x
                    + lw * (jnp.log1p(jnp.exp(-jnp.abs(x))) + jnp.maximum(-x, 0.0)))


if __name__ == "__main__":
    key = jax.random.PRNGKey(0)
    pos_weight = 2.13  # BCEWithLogitsLoss pos_weight (module init-time constant)

    test_shapes = [
        (2, 4, 16, 16),   # primary: single-tile straight path (2048 elems)
        (2, 4, 64, 64),   # 2 tiles, inner-loop path, no mask
        (2, 4, 72, 64),   # 2 tiles, masked last tile (pl.when-gated)
        (2, 1049),        # ragged: kernel on aligned prefix + jnp sub-row tail
    ]

    for shape in test_shapes:
        key, k1, k2 = jax.random.split(key, 3)
        ypred = jax.random.normal(k1, shape, dtype=jnp.float32)                 # logits
        ytgt = (jax.random.uniform(k2, shape) > 0.5).astype(jnp.float32)        # targets

        loss = simple_loss(ypred, ytgt, pos_weight)
        loss = jax.block_until_ready(loss)

        ref = _ref_loss(ypred, ytgt, pos_weight)
        assert jnp.allclose(loss, ref, rtol=1e-5, atol=1e-5), (shape, loss, ref)

    print("KERNEL_OK")
</pallas_src>

<mosaic_0001>
module attributes {stable_mosaic.version = 11 : i64} {
  func.func @kernel(%arg0: i32, %arg1: memref<16x128xf32, #tpu.memory_space<vmem>>, %arg2: memref<16x128xf32, #tpu.memory_space<vmem>>, %arg3: memref<1x8x128xf32, #tpu.memory_space<vmem>>) attributes {dimension_semantics = [#tpu.dimension_semantics<parallel>], iteration_bounds = array<i64: 1>, scalar_prefetch = 0 : i64, scratch_operands = 0 : i64, tpu.core_type = #tpu.core_type<tc>, window_params = [{transform_indices = @transform_0, window_bounds = array<i64: 16, 128>}, {transform_indices = @transform_1, window_bounds = array<i64: 16, 128>}, {transform_indices = @transform_2, window_bounds = array<i64: 1, 8, 128>}]} {
    %c0 = arith.constant 0 : index
    %c0_0 = arith.constant 0 : index
    %0 = vector.load %arg1[%c0, %c0_0] : memref<16x128xf32, #tpu.memory_space<vmem>>, vector<16x128xf32>
    %c0_1 = arith.constant 0 : index
    %c0_2 = arith.constant 0 : index
    %1 = vector.load %arg2[%c0_1, %c0_2] : memref<16x128xf32, #tpu.memory_space<vmem>>, vector<16x128xf32>
    %2 = math.absf %0 : vector<16x128xf32>
    %cst = arith.constant 0.000000e+00 : f32
    %3 = vector.broadcast %cst : f32 to vector<16x128xf32>
    %4 = arith.subf %3, %2 : vector<16x128xf32>
    %5 = math.exp %4 : vector<16x128xf32>
    %6 = math.log1p %5 : vector<16x128xf32>
    %cst_3 = arith.constant 0.000000e+00 : f32
    %7 = vector.broadcast %cst_3 : f32 to vector<16x128xf32>
    %8 = arith.subf %7, %0 : vector<16x128xf32>
    %cst_4 = arith.constant 0.000000e+00 : f32
    %9 = vector.broadcast %cst_4 : f32 to vector<16x128xf32>
    %10 = arith.maximumf %8, %9 : vector<16x128xf32>
    %11 = arith.addf %6, %10 : vector<16x128xf32>
    %cst_5 = arith.constant 1.130000e+00 : f32
    %12 = vector.broadcast %cst_5 : f32 to vector<16x128xf32>
    %13 = arith.mulf %12, %1 : vector<16x128xf32>
    %cst_6 = arith.constant 1.000000e+00 : f32
    %14 = vector.broadcast %cst_6 : f32 to vector<16x128xf32>
    %15 = arith.addf %13, %14 : vector<16x128xf32>
    %cst_7 = arith.constant 1.000000e+00 : f32
    %16 = vector.broadcast %cst_7 : f32 to vector<16x128xf32>
    %17 = arith.subf %16, %1 : vector<16x128xf32>
    %18 = arith.mulf %17, %0 : vector<16x128xf32>
    %19 = arith.mulf %15, %11 : vector<16x128xf32>
    %20 = arith.addf %18, %19 : vector<16x128xf32>
    %21 = vector.shape_cast %20 : vector<16x128xf32> to vector<2x8x128xf32>
    %cst_8 = arith.constant dense<0.000000e+00> : vector<8x128xf32>
    %22 = vector.multi_reduction <add>, %21, %cst_8 [0] : vector<2x8x128xf32> to vector<8x128xf32>
    %23 = vector.shape_cast %22 : vector<8x128xf32> to vector<1x8x128xf32>
    %c0_9 = arith.constant 0 : index
    %c0_10 = arith.constant 0 : index
    %c0_11 = arith.constant 0 : index
    %24 = vector.load %arg3[%c0_9, %c0_10, %c0_11] : memref<1x8x128xf32, #tpu.memory_space<vmem>>, vector<1x8x128xf32>
    tpu.vector_store %arg3[%c0_9, %c0_10, %c0_11], %23 {strides = array<i32>} : memref<1x8x128xf32, #tpu.memory_space<vmem>>, vector<1x8x128xf32>,
    return
  }
  func.func @transform_0(%arg0: i32) -> (i32, i32) {
    %c0_i32 = arith.constant 0 : i32
    %c0_i32_0 = arith.constant 0 : i32
    return %arg0, %c0_i32 : i32, i32
  }
  func.func @transform_1(%arg0: i32) -> (i32, i32) {
    %c0_i32 = arith.constant 0 : i32
    %c0_i32_0 = arith.constant 0 : i32
    return %arg0, %c0_i32 : i32, i32
  }
  func.func @transform_2(%arg0: i32) -> (i32, i32, i32) {
    %c0_i32 = arith.constant 0 : i32
    %c0_i32_0 = arith.constant 0 : i32
    %c0_i32_1 = arith.constant 0 : i32
    return %arg0, %c0_i32, %c0_i32_0 : i32, i32, i32
  }
}

</mosaic_0001>

<llo_original>
// kernel: tpu_custom_call.1
$region0: #{tpu_custom_call.1}
  #allocation0 [shape = 'u32[]', space=smem, size = 0x4, offset = 0x4, fixed_abs, tag = 'smem constant byte address 0x4 - core index']
  #allocation1 [shape = 'u32[72,128]{1,0:T(1,128)}', space=vmem, size = 0x9000, scoped, tag = 'internal scratch']
  %s0 = inlined_call_operand.hbm [shape: f32[16,128], index: 0, kind: input, shape index: {}]
  %s1 = inlined_call_operand.hbm [shape: f32[16,128], index: 1, kind: input, shape index: {}]
  %s2 = inlined_call_operand.hbm [shape: f32[1,8,128], index: 2, kind: output, shape index: {}]
  %s3 = sld [smem:[#allocation0]]
  $region26: #{tpu_custom_call.1} parent=0
    _
  %s5 = ssub.s32 1, %s3
  %s6 = scalar_select 0, %s5, %s3
  $region1: #{tpu_custom_call.1} parent=0
    #allocation2 [shape = 'u8[8192]{0}', space=vmem, size = 0x2000, scoped, tag = 'input window, operand 0, single buffered']
    #allocation3 [shape = 's32[1]{0}', space=sflag, size = 0x4, scoped, tag = 'scoped memory for tpu_custom_call.1']
    #allocation4 [shape = 's32[1]{0}', space=sflag, size = 0x4, scoped, tag = 'scoped memory for tpu_custom_call.1']
    #allocation5 [shape = 'u8[8192]{0}', space=vmem, size = 0x2000, scoped, tag = 'input window, operand 1, single buffered']
    #allocation6 [shape = 's32[1]{0}', space=sflag, size = 0x4, scoped, tag = 'scoped memory for tpu_custom_call.1']
    #allocation7 [shape = 'u8[4096]{0}', space=vmem, size = 0x1000, scoped, tag = 'output window, operand 0, single buffered']
    %7 = vsyncpa [#allocation3], 0
    %8 = vsyncpa [#allocation6], 0
    %9 = vsyncpa [#allocation4], 0
    // Predicated region
    $region2: #{tpu_custom_call.1} parent=1 // pred_check
      _
    $region3: #{tpu_custom_call.1} parent=1 // pred_check_branch
      %11 = sbr.rel (0) target = $region5
    $region4: #{tpu_custom_call.1} parent=1 // pred_region
      %13 = vsyncadd [#allocation3], 0
      %s14 = sshll.u32 %s0, 4
      %s15 = int_to_ptr.hbm [resolvable:$true] %s14
      %s16 = sshll.u32 [#allocation2], 4
      %s17 = int_to_ptr.vmem [resolvable:$true] %s16
      %22 = dma.hbm_to_vmem [thread:$0]  %s15, 256, %s17, [#allocation3], 128, 128, 8
    $region5: #{tpu_custom_call.1} parent=1 // pred_fallthru
      _
    // Predicated region
    $region6: #{tpu_custom_call.1} parent=1 // pred_check
      _
    $region7: #{tpu_custom_call.1} parent=1 // pred_check_branch
      %24 = sbr.rel (0) target = $region9
    $region8: #{tpu_custom_call.1} parent=1 // pred_region
      %26 = vsyncadd [#allocation6], 0
      %s27 = sshll.u32 %s1, 4
      %s28 = int_to_ptr.hbm [resolvable:$true] %s27
      %s29 = sshll.u32 [#allocation5], 4
      %s30 = int_to_ptr.vmem [resolvable:$true] %s29
      %35 = dma.hbm_to_vmem [thread:$0]  %s28, 256, %s30, [#allocation6], 128, 128, 8
    $region9: #{tpu_custom_call.1} parent=1 // pred_fallthru
      _
    // Predicated region
    $region10: #{tpu_custom_call.1} parent=1 // pred_check
      _
    $region11: #{tpu_custom_call.1} parent=1 // pred_check_branch
      %37 = sbr.rel (0) target = $region13
    $region12: #{tpu_custom_call.1} parent=1 // pred_region
      %39 = dma.done [#allocation3], 256
    $region13: #{tpu_custom_call.1} parent=1 // pred_fallthru
      _
    // Predicated region
    $region14: #{tpu_custom_call.1} parent=1 // pred_check
      _
    $region15: #{tpu_custom_call.1} parent=1 // pred_check_branch
      %41 = sbr.rel (0) target = $region17
    $region16: #{tpu_custom_call.1} parent=1 // pred_region
      %43 = dma.done [#allocation6], 256
    $region17: #{tpu_custom_call.1} parent=1 // pred_fallthru
      _
    %v44 = vld [vmem:[#allocation2] sm:$0xff]
    %v45 = vld [vmem:[#allocation2 + $0x8] sm:$0xff]
    %v46 = vld [vmem:[#allocation5] sm:$0xff]
    %v47 = vld [vmem:[#allocation5 + $0x8] sm:$0xff]
    %v48 = vand.u32 2147483647, %v44
    %v49 = vand.u32 2147483647, %v45
    %v50 = vsub.f32 0.0, %v48
    %v51 = vsub.f32 0.0, %v49
    %v52 = vmul.f32 %v50, 1.442695
    %v53 = vpow.pop %v52
    %v54 = vmul.f32 %v51, 1.442695
    %v55 = vpow.pop %v54
    %v56 = vadd.f32 %v53, 1.0
    %v57 = vlog2.pop %v56
    %v58 = vmul.f32 %v57, 0.6931472
    %v59 = vmul.f32 -0.5, %v53
    %v60 = vadd.f32 %v59, 1.0
    %v61 = vmul.f32 %v60, %v53
    %v62 = vand.u32 2147483647, %v53
    %vm63 = vcmp.lt.f32.partialorder %v62, 0.0004427343
    %v64 = vsel %vm63, %v61, %v58
    %v65 = vadd.f32 %v55, 1.0
    %v66 = vlog2.pop %v65
    %v67 = vmul.f32 %v66, 0.6931472
    %v68 = vmul.f32 -0.5, %v55
    %v69 = vadd.f32 %v68, 1.0
    %v70 = vmul.f32 %v69, %v55
    %v71 = vand.u32 2147483647, %v55
    %vm72 = vcmp.lt.f32.partialorder %v71, 0.0004427343
    %v73 = vsel %vm72, %v70, %v67
    %v74 = vsub.f32 0.0, %v44
    %v75 = vsub.f32 0.0, %v45
    %v76 = vmax.f32 %v74, 0.0
    %v77 = vmax.f32 %v75, 0.0
    %v78 = vadd.f32 %v64, %v76
    %v79 = vadd.f32 %v73, %v77
    %v80 = vmul.f32 %v46, 1.13
    %v81 = vmul.f32 %v47, 1.13
    %v82 = vadd.f32 %v80, 1.0
    %v83 = vadd.f32 %v81, 1.0
    %v84 = vsub.f32 1.0, %v46
    %v85 = vsub.f32 1.0, %v47
    %v86 = vmul.f32 %v84, %v44
    %v87 = vmul.f32 %v85, %v45
    %v88 = vmul.f32 %v82, %v78
    %v89 = vmul.f32 %v83, %v79
    %v90 = vadd.f32 %v86, %v88
    %v91 = vadd.f32 %v87, %v89
    %v92 = vadd.f32 %v90, %v91
    %93 = vst [vmem:[#allocation7] sm:$0xff] %v92
    // Predicated region
    $region18: #{tpu_custom_call.1} parent=1 // pred_check
      _
    $region19: #{tpu_custom_call.1} parent=1 // pred_check_branch
      %95 = sbr.rel (0) target = $region21
    $region20: #{tpu_custom_call.1} parent=1 // pred_region
      %97 = vsyncadd [#allocation4], 0
      %s99 = sshll.u32 [#allocation7], 4
      %s100 = int_to_ptr.vmem [resolvable:$true] %s99
      %s101 = sshll.u32 %s2, 4
      %s102 = int_to_ptr.hbm [resolvable:$true] %s101
      %104 = dma.vmem_to_hbm [thread:$0]  %s100, 128, %s102, [#allocation4]
    $region21: #{tpu_custom_call.1} parent=1 // pred_fallthru
      _
    // Predicated region
    $region22: #{tpu_custom_call.1} parent=1 // pred_check
      _
    $region23: #{tpu_custom_call.1} parent=1 // pred_check_branch
      %106 = sbr.rel (0) target = $region25
    $region24: #{tpu_custom_call.1} parent=1 // pred_region
      %108 = dma.done [#allocation4], 128
    $region25: #{tpu_custom_call.1} parent=1 // pred_fallthru
      _
    %109 = vsyncpa [#allocation3], 1
    %110 = vsyncpa [#allocation6], 1
    %111 = vsyncpa [#allocation4], 1

</llo_original>
